<compile_context>
chip_gen: v6e
topology: v6e:2x2x1
jax: 0.10.0
libtpu: 0.0.40
codegen_flags: <defaults>
</compile_context>

<pallas_src>
import jax
import jax.numpy as jnp
from jax.experimental import pallas as pl
from jax.experimental.pallas import tpu as pltpu

_LANE = 128
_ROW_ALIGN = 16      # safe sublane multiple for both f32 (8) and bf16 (16) tiles
_MIN_SPLIT_TM = 256  # only force a >=2-step grid when tiles stay at least this big


def _round_up(x, m):
    return (x + m - 1) // m * m


def _pick_tile(M, tm):
    """Pick (tile_rows, padded_M).  Prefers tiles that divide M (no x pad) and
    keeps >= 2 grid steps when there is enough work (v7x 2-TC sharding)."""
    tm_hi = _round_up(min(int(tm), _round_up(M, _ROW_ALIGN)), _ROW_ALIGN)
    if M >= 2 * _MIN_SPLIT_TM:
        tm_hi = min(tm_hi, max(_ROW_ALIGN, (M // 2) // _ROW_ALIGN * _ROW_ALIGN))
    # Largest 16-aligned tile <= tm_hi that divides M exactly -> no padding,
    # no post-kernel row slice.
    for cand in range(tm_hi, _ROW_ALIGN - 1, -_ROW_ALIGN):
        if M % cand == 0:
            return cand, M
    return tm_hi, _round_up(M, tm_hi)


def _span_head_kernel(x_ref, w_ref, b_ref, start_ref, end_ref):
    """Fused dual-head Linear + bias + ReLU on one row tile.

    x_ref:     [TM, H]   VMEM (f32 or bf16)
    w_ref:     [H, Cp]   VMEM fused [W_start | W_end | 0-pad] weight
    b_ref:     [1, Cp]   VMEM fused bias, f32
    start_ref: [TM, C]   VMEM f32 (narrow; last dim == full array dim)
    end_ref:   [TM, C]   VMEM f32
    """
    acc = jnp.dot(x_ref[...], w_ref[...], preferred_element_type=jnp.float32)
    acc = jnp.maximum(acc + b_ref[...], 0.0)        # f32 bias add + ReLU
    C = start_ref.shape[1]
    start_ref[...] = acc[:, :C].astype(start_ref.dtype)
    end_ref[...] = acc[:, C:2 * C].astype(end_ref.dtype)


def pack_span_head_params(w_start, b_start, w_end, b_end, *, dtype=jnp.float32):
    """One-time packing of the two heads into a lane-dense fused weight/bias.

    w_start, w_end: [H, C]  (transpose of PyTorch nn.Linear.weight [C, H])
    b_start, b_end: [C]
    Returns (w_fused [H, Cp=128k] in `dtype`, b_fused [1, Cp] f32, C).
    """
    H, C = w_start.shape
    assert w_end.shape == (H, C), "w_end must be [H, C] like w_start"
    assert b_start.shape == (C,) and b_end.shape == (C,)
    Cp = _round_up(max(2 * C, _LANE), _LANE)
    w_fused = jnp.zeros((H, Cp), dtype)
    w_fused = w_fused.at[:, :C].set(w_start.astype(dtype))
    w_fused = w_fused.at[:, C:2 * C].set(w_end.astype(dtype))
    b_fused = jnp.zeros((1, Cp), jnp.float32)
    b_fused = b_fused.at[0, :C].set(b_start.astype(jnp.float32))
    b_fused = b_fused.at[0, C:2 * C].set(b_end.astype(jnp.float32))
    return w_fused, b_fused, C


def span_model_heads_packed(bert_output, w_fused, b_fused, class_num,
                            *, input_dtype=None, tm=1024):
    """Hot path: applies the pre-packed start/end classifiers to BERT output.

    bert_output: [B, S, H]
    w_fused:     [H, Cp]  (from pack_span_head_params)
    b_fused:     [1, Cp]  f32
    returns: (start_output, end_output), each [B, S, class_num] float32
    """
    B, S, H = bert_output.shape
    assert w_fused.shape[0] == H, "w_fused must be [H, Cp]"
    C = int(class_num)
    Cp = w_fused.shape[1]
    M = B * S

    tm_eff, Mp = _pick_tile(M, tm)

    x2d = bert_output.reshape(M, H)
    if input_dtype is not None and x2d.dtype != input_dtype:
        # NOTE: host-side cast is an extra un-pipelined HBM pass over x;
        # prefer the producer (BERT) emitting this dtype directly.
        x2d = x2d.astype(input_dtype)
    if w_fused.dtype != x2d.dtype:
        w_fused = w_fused.astype(x2d.dtype)   # tiny ([H, 128]) cast
    if Mp != M:
        # Only reached when no 16-aligned tile divides M; padded rows are
        # ReLU(bias) and are sliced off below (narrow, cheap).
        x2d = jnp.pad(x2d, ((0, Mp - M), (0, 0)))

    grid = (Mp // tm_eff,)

    cost = pl.CostEstimate(
        flops=2 * Mp * H * Cp,
        transcendentals=0,
        bytes_accessed=(Mp * H * x2d.dtype.itemsize        # x read
                        + H * Cp * w_fused.dtype.itemsize  # fused weight
                        + Cp * 4                           # fused bias
                        + 2 * Mp * C * 4),                 # narrow outputs
    )

    start2d, end2d = pl.pallas_call(
        _span_head_kernel,
        out_shape=(jax.ShapeDtypeStruct((Mp, C), jnp.float32),
                   jax.ShapeDtypeStruct((Mp, C), jnp.float32)),
        grid=grid,
        in_specs=[
            pl.BlockSpec((tm_eff, H), lambda i: (i, 0)),   # x row tile (pipelined)
            pl.BlockSpec((H, Cp), lambda i: (0, 0)),       # fused weight (resident)
            pl.BlockSpec((1, Cp), lambda i: (0, 0)),       # fused bias (resident)
        ],
        out_specs=(
            pl.BlockSpec((tm_eff, C), lambda i: (i, 0)),   # start head (narrow)
            pl.BlockSpec((tm_eff, C), lambda i: (i, 0)),   # end head (narrow)
        ),
        compiler_params=pltpu.CompilerParams(
            dimension_semantics=("parallel",),             # shards M across TCs on v7x
            vmem_limit_bytes=32 * 1024 * 1024,             # safe on v5e/v6e/v7x
        ),
        cost_estimate=cost,
    )(x2d, w_fused, b_fused)

    if Mp != M:
        start2d = start2d[:M]
        end2d = end2d[:M]
    return start2d.reshape(B, S, C), end2d.reshape(B, S, C)


def span_model_heads(bert_output, w_start, b_start, w_end, b_end,
                     *, input_dtype=None, tm=1024):
    """Convenience wrapper: packs the heads then runs the fused kernel.

    For repeated inference, call pack_span_head_params once and use
    span_model_heads_packed directly (avoids per-call packing).
    """
    H = bert_output.shape[-1]
    assert w_start.shape[0] == H and w_end.shape[0] == H, (
        "weights must be [H, C] (transpose of PyTorch nn.Linear.weight [C, H])")
    pack_dtype = input_dtype if input_dtype is not None else jnp.float32
    w_fused, b_fused, C = pack_span_head_params(
        w_start, b_start, w_end, b_end, dtype=pack_dtype)
    return span_model_heads_packed(bert_output, w_fused, b_fused, C,
                                   input_dtype=input_dtype, tm=tm)


def _reference(bert_output, w_start, b_start, w_end, b_end):
    s = jnp.maximum(jnp.einsum("bsh,hc->bsc", bert_output, w_start) + b_start, 0.0)
    e = jnp.maximum(jnp.einsum("bsh,hc->bsc", bert_output, w_end) + b_end, 0.0)
    return s, e


if __name__ == "__main__":
    # Small shapes consistent with the module: batch=2, seq=8,
    # hidden_size=32, class_num=4.
    B, S, H, C = 2, 8, 32, 4

    key = jax.random.PRNGKey(0)
    k_x, k_ws, k_bs, k_we, k_be = jax.random.split(key, 5)

    # Synthetic "BERT sequence output".
    bert_output = jax.random.normal(k_x, (B, S, H), dtype=jnp.float32)

    # Deterministic nn.Linear-style uniform init in [-1/sqrt(H), 1/sqrt(H)].
    bound = 1.0 / jnp.sqrt(jnp.float32(H))
    w_start = jax.random.uniform(k_ws, (H, C), jnp.float32, -bound, bound)
    b_start = jax.random.uniform(k_bs, (C,), jnp.float32, -bound, bound)
    w_end = jax.random.uniform(k_we, (H, C), jnp.float32, -bound, bound)
    b_end = jax.random.uniform(k_be, (C,), jnp.float32, -bound, bound)

    ref_s, ref_e = _reference(bert_output, w_start, b_start, w_end, b_end)

    # f32 path via the one-time-packed hot path: tight correctness check.
    w_fused, b_fused, cls = pack_span_head_params(w_start, b_start, w_end, b_end)
    start_out, end_out = span_model_heads_packed(bert_output, w_fused, b_fused, cls)
    jax.block_until_ready((start_out, end_out))
    assert start_out.shape == (B, S, C) and end_out.shape == (B, S, C)
    assert jnp.allclose(start_out, ref_s, atol=1e-5, rtol=1e-5)
    assert jnp.allclose(end_out, ref_e, atol=1e-5, rtol=1e-5)

    # Convenience wrapper, bf16-input path (x and weights in bf16; f32
    # accumulate/epilogue): looser tolerance.
    start_bf, end_bf = span_model_heads(bert_output, w_start, b_start,
                                        w_end, b_end,
                                        input_dtype=jnp.bfloat16)
    jax.block_until_ready((start_bf, end_bf))
    assert jnp.allclose(start_bf, ref_s, atol=5e-2, rtol=5e-2)
    assert jnp.allclose(end_bf, ref_e, atol=5e-2, rtol=5e-2)

    print("KERNEL_OK")
</pallas_src>

<mosaic_0001>
module attributes {stable_mosaic.version = 11 : i64} {
  func.func @_span_head_kernel(%arg0: i32, %arg1: memref<16x32xf32, #tpu.memory_space<vmem>>, %arg2: memref<32x128xf32, #tpu.memory_space<vmem>>, %arg3: memref<1x128xf32, #tpu.memory_space<vmem>>, %arg4: memref<16x4xf32, #tpu.memory_space<vmem>>, %arg5: memref<16x4xf32, #tpu.memory_space<vmem>>) attributes {dimension_semantics = [#tpu.dimension_semantics<parallel>], iteration_bounds = array<i64: 1>, scalar_prefetch = 0 : i64, scratch_operands = 0 : i64, tpu.core_type = #tpu.core_type<tc>, window_params = [{transform_indices = @transform_0, window_bounds = array<i64: 16, 32>}, {pipeline_mode = #tpu.pipeline_mode<synchronous>, transform_indices = @transform_1, window_bounds = array<i64: 32, 128>}, {pipeline_mode = #tpu.pipeline_mode<synchronous>, transform_indices = @transform_2, window_bounds = array<i64: 1, 128>}, {transform_indices = @transform_3, window_bounds = array<i64: 16, 4>}, {transform_indices = @transform_4, window_bounds = array<i64: 16, 4>}]} {
    %c0 = arith.constant 0 : index
    %c0_0 = arith.constant 0 : index
    %0 = vector.load %arg1[%c0, %c0_0] : memref<16x32xf32, #tpu.memory_space<vmem>>, vector<16x32xf32>
    %c0_1 = arith.constant 0 : index
    %c0_2 = arith.constant 0 : index
    %1 = vector.load %arg2[%c0_1, %c0_2] : memref<32x128xf32, #tpu.memory_space<vmem>>, vector<32x128xf32>
    %cst = arith.constant dense<0.000000e+00> : vector<16x128xf32>
    %2 = tpu.matmul %0, %1, %cst {dimension_numbers = #tpu.dot_dimension_numbers<[1], [0], [0], [1], [0, 0, 1, 1], [], []>} : vector<16x32xf32>, vector<32x128xf32>, vector<16x128xf32> -> vector<16x128xf32>
    %c0_3 = arith.constant 0 : index
    %c0_4 = arith.constant 0 : index
    %3 = vector.load %arg3[%c0_3, %c0_4] : memref<1x128xf32, #tpu.memory_space<vmem>>, vector<1x128xf32>
    %4 = vector.broadcast %3 : vector<1x128xf32> to vector<16x128xf32>
    %5 = arith.addf %2, %4 : vector<16x128xf32>
    %cst_5 = arith.constant 0.000000e+00 : f32
    %6 = vector.broadcast %cst_5 : f32 to vector<16x128xf32>
    %7 = arith.maximumf %5, %6 : vector<16x128xf32>
    %8 = vector.extract_strided_slice %7 {offsets = [0, 0], sizes = [16, 4], strides = [1, 1]} : vector<16x128xf32> to vector<16x4xf32>
    %c0_6 = arith.constant 0 : index
    %c0_7 = arith.constant 0 : index
    %9 = vector.load %arg4[%c0_6, %c0_7] : memref<16x4xf32, #tpu.memory_space<vmem>>, vector<16x4xf32>
    tpu.vector_store %arg4[%c0_6, %c0_7], %8 {strides = array<i32>} : memref<16x4xf32, #tpu.memory_space<vmem>>, vector<16x4xf32>,
    %10 = vector.extract_strided_slice %7 {offsets = [0, 4], sizes = [16, 4], strides = [1, 1]} : vector<16x128xf32> to vector<16x4xf32>
    %c0_8 = arith.constant 0 : index
    %c0_9 = arith.constant 0 : index
    %11 = vector.load %arg5[%c0_8, %c0_9] : memref<16x4xf32, #tpu.memory_space<vmem>>, vector<16x4xf32>
    tpu.vector_store %arg5[%c0_8, %c0_9], %10 {strides = array<i32>} : memref<16x4xf32, #tpu.memory_space<vmem>>, vector<16x4xf32>,
    return
  }
  func.func @transform_0(%arg0: i32) -> (i32, i32) {
    %c0_i32 = arith.constant 0 : i32
    %c0_i32_0 = arith.constant 0 : i32
    return %arg0, %c0_i32 : i32, i32
  }
  func.func @transform_1(%arg0: i32) -> (i32, i32) {
    %c0_i32 = arith.constant 0 : i32
    %c0_i32_0 = arith.constant 0 : i32
    %c0_i32_1 = arith.constant 0 : i32
    return %c0_i32, %c0_i32_0 : i32, i32
  }
  func.func @transform_2(%arg0: i32) -> (i32, i32) {
    %c0_i32 = arith.constant 0 : i32
    %c0_i32_0 = arith.constant 0 : i32
    %c0_i32_1 = arith.constant 0 : i32
    return %c0_i32, %c0_i32_0 : i32, i32
  }
  func.func @transform_3(%arg0: i32) -> (i32, i32) {
    %c0_i32 = arith.constant 0 : i32
    %c0_i32_0 = arith.constant 0 : i32
    return %arg0, %c0_i32 : i32, i32
  }
  func.func @transform_4(%arg0: i32) -> (i32, i32) {
    %c0_i32 = arith.constant 0 : i32
    %c0_i32_0 = arith.constant 0 : i32
    return %arg0, %c0_i32 : i32, i32
  }
}

</mosaic_0001>

<llo_original>
// kernel: tpu_custom_call.1
$region0: #{tpu_custom_call.1}
  #allocation0 [shape = 'u32[]', space=smem, size = 0x4, offset = 0x4, fixed_abs, tag = 'smem constant byte address 0x4 - core index']
  #allocation1 [shape = 'u32[144,128]{1,0:T(1,128)}', space=vmem, size = 0x12000, scoped, tag = 'internal scratch']
  %s0 = inlined_call_operand.hbm [shape: f32[16,32], index: 0, kind: input, shape index: {}]
  %s1 = inlined_call_operand.hbm [shape: f32[32,128], index: 1, kind: input, shape index: {}]
  %s2 = inlined_call_operand.vmem [shape: f32[1,128], index: 2, kind: input, shape index: {}]
  %s3 = inlined_call_operand.vmem [shape: f32[16,4], index: 3, kind: output, shape index: {0}]
  %s4 = inlined_call_operand.vmem [shape: f32[16,4], index: 4, kind: output, shape index: {1}]
  %5 = xla_tuple %s3, %s4
  %s6 = sld [smem:[#allocation0]]
  $region38: #{tpu_custom_call.1} parent=0
    _
  %s8 = ssub.s32 1, %s6
  %s9 = scalar_select 0, %s8, %s6
  $region1: #{tpu_custom_call.1} parent=0
    #allocation2 [shape = 'u8[8192]{0}', space=vmem, size = 0x2000, scoped, tag = 'input window, operand 0, single buffered']
    #allocation3 [shape = 's32[1]{0}', space=sflag, size = 0x4, scoped, tag = 'scoped memory for tpu_custom_call.1']
    #allocation4 [shape = 'u8[16384]{0}', space=vmem, size = 0x4000, scoped, tag = 'input window, operand 1, single buffered']
    #allocation5 [shape = 's32[1]{0}', space=sflag, size = 0x4, scoped, tag = 'scoped memory for tpu_custom_call.1']
    %10 = vsyncpa [#allocation3], 0
    %11 = vsyncpa [#allocation5], 0
    // Predicated region
    $region2: #{tpu_custom_call.1} parent=1 // pred_check
      _
    $region3: #{tpu_custom_call.1} parent=1 // pred_check_branch
      %13 = sbr.rel (0) target = $region5
    $region4: #{tpu_custom_call.1} parent=1 // pred_region
      %s15 = ssub.s32 256, 256
      %16 = vsyncadd [#allocation3], %s15
      %s17 = sshll.u32 [#allocation2], 4
      %s18 = int_to_ptr.vmem [resolvable:$true] %s17
      %23 = dma.hbm_to_vmem [thread:$0]  %s0, 256, %s18, [#allocation3], 128, 128, 8
    $region5: #{tpu_custom_call.1} parent=1 // pred_fallthru
      _
    // Predicated region
    $region6: #{tpu_custom_call.1} parent=1 // pred_check
      _
    $region7: #{tpu_custom_call.1} parent=1 // pred_check_branch
      %25 = sbr.rel (0) target = $region9
    $region8: #{tpu_custom_call.1} parent=1 // pred_region
      %s27 = ssub.s32 512, 512
      %28 = vsyncadd [#allocation5], %s27
      %s29 = sshll.u32 [#allocation4], 4
      %s30 = int_to_ptr.vmem [resolvable:$true] %s29
      %35 = dma.hbm_to_vmem [thread:$0]  %s1, 512, %s30, [#allocation5], 128, 128, 8
    $region9: #{tpu_custom_call.1} parent=1 // pred_fallthru
      _
    // Predicated region
    $region10: #{tpu_custom_call.1} parent=1 // pred_check
      _
    $region11: #{tpu_custom_call.1} parent=1 // pred_check_branch
      %37 = sbr.rel (0) target = $region13
    $region12: #{tpu_custom_call.1} parent=1 // pred_region
      _
    $region13: #{tpu_custom_call.1} parent=1 // pred_fallthru
      _
    // Predicated region
    $region14: #{tpu_custom_call.1} parent=1 // pred_check
      _
    $region15: #{tpu_custom_call.1} parent=1 // pred_check_branch
      %39 = sbr.rel (0) target = $region17
    $region16: #{tpu_custom_call.1} parent=1 // pred_region
      %40 = dma.done [#allocation3], 256
    $region17: #{tpu_custom_call.1} parent=1 // pred_fallthru
      _
    // Predicated region
    $region18: #{tpu_custom_call.1} parent=1 // pred_check
      _
    $region19: #{tpu_custom_call.1} parent=1 // pred_check_branch
      %42 = sbr.rel (0) target = $region21
    $region20: #{tpu_custom_call.1} parent=1 // pred_region
      %43 = dma.done [#allocation5], 512
    $region21: #{tpu_custom_call.1} parent=1 // pred_fallthru
      _
    %v44 = vld [vmem:[#allocation2] sm:$0xff]
    %v45 = vld [vmem:[#allocation2 + $0x8] sm:$0xff]
    %v46 = vld [vmem:[#allocation4] sm:$0xff]
    %v47 = vld [vmem:[#allocation4 + $0x8] sm:$0xff]
    %v48 = vld [vmem:[#allocation4 + $0x10] sm:$0xff]
    %v49 = vld [vmem:[#allocation4 + $0x18] sm:$0xff]
    %v50 = vld [vmem:[%s2] sm:$0x1]
    %v52 = vlaneseq
    %v53 = vshrl.u32 %v52, 7
    %v54 = vsub.s32 0, %v53
    %v55 = vrot.slane %v50, %v54
    %vm57 = vcmask 261120
    %v59 = vsel %vm57, %v44, 0
    %v62 = vsel %vm57, %v45, 0
    %64 = vmatprep.subr.mxu0 0.0
    %65 = vmatpush1.msra.mxu0 0.0
    %66 = vmatprep.subr.mxu0 0.0
    %67 = vmatpush1.msra.mxu0 0.0
    %68 = vmatprep.subr.mxu0 0.0
    %69 = vmatpush1.msra.mxu0 0.0
    %70 = vmatprep.subr.mxu0 0.0
    %71 = vmatpush1.msra.mxu0 0.0
    %72 = vmatprep.subr.mxu0 0.0
    %73 = vmatpush1.msra.mxu0 0.0
    %74 = vmatprep.subr.mxu0 0.0
    %75 = vmatpush1.msra.mxu0 0.0
    %76 = vmatprep.subr.mxu0 0.0
    %77 = vmatpush1.msra.mxu0 0.0
    %78 = vmatprep.subr.mxu0 0.0
    %79 = vmatpush1.msra.mxu0 0.0
    %80 = vmatprep.subr.mxu0 0.0
    %81 = vmatpush1.msra.mxu0 0.0
    %82 = vmatprep.subr.mxu0 0.0
    %83 = vmatpush1.msra.mxu0 0.0
    %84 = vmatprep.subr.mxu0 0.0
    %85 = vmatpush1.msra.mxu0 0.0
    %86 = vmatprep.subr.mxu0 0.0
    %87 = vmatpush1.msra.mxu0 0.0
    %88 = vmatprep.subr.mxu0 0.0
    %89 = vmatpush1.msra.mxu0 %v49
    %90 = vmatprep.subr.mxu0 0.0
    %91 = vmatpush1.msra.mxu0 %v48
    %92 = vmatprep.subr.mxu0 0.0
    %93 = vmatpush1.msra.mxu0 %v47
    %94 = vmatprep.subr.mxu0 0.0
    %95 = vmatpush1.msra.mxu0 %v46
    %96 = vmatprep.subr.mxu0 0.0
    %97 = vmatpush2.msra.mxu0 0.0
    %98 = vmatprep.subr.mxu0 0.0
    %99 = vmatpush2.msra.mxu0 0.0
    %100 = vmatprep.subr.mxu0 0.0
    %101 = vmatpush2.msra.mxu0 0.0
    %102 = vmatprep.subr.mxu0 0.0
    %103 = vmatpush2.msra.mxu0 0.0
    %104 = vmatprep.subr.mxu0 0.0
    %105 = vmatpush2.msra.mxu0 0.0
    %106 = vmatprep.subr.mxu0 0.0
    %107 = vmatpush2.msra.mxu0 0.0
    %108 = vmatprep.subr.mxu0 0.0
    %109 = vmatpush2.msra.mxu0 0.0
    %110 = vmatprep.subr.mxu0 0.0
    %111 = vmatpush2.msra.mxu0 0.0
    %112 = vmatprep.subr.mxu0 0.0
    %113 = vmatpush2.msra.mxu0 0.0
    %114 = vmatprep.subr.mxu0 0.0
    %115 = vmatpush2.msra.mxu0 0.0
    %116 = vmatprep.subr.mxu0 0.0
    %117 = vmatpush2.msra.mxu0 0.0
    %118 = vmatprep.subr.mxu0 0.0
    %119 = vmatpush2.msra.mxu0 0.0
    %120 = vmatprep.subr.mxu0 0.0
    %121 = vmatpush2.msra.mxu0 0.0
    %122 = vmatprep.subr.mxu0 0.0
    %123 = vmatpush2.msra.mxu0 0.0
    %124 = vmatprep.subr.mxu0 0.0
    %125 = vmatpush2.msra.mxu0 0.0
    %126 = vmatprep.subr.mxu0 0.0
    %127 = vmatpush2.msra.mxu0 0.0
    %128 = vmatprep.mubr.f32.mxu0 0.0
    %129 = vmatmul.mubr.f32.gmra.mxu0 %v59
    %v130 = vpop.f32.mrf.mxu0
    %v131 = vadd.f32 %v55, %v130
    %v132 = vpop.f32.mrf.mxu0
    %133 = vmatprep.mubr.f32.mxu0 0.0
    %134 = vmatmul.mubr.f32.gmra.mxu0 %v62
    %v135 = vpop.f32.mrf.mxu0
    %v136 = vadd.f32 %v55, %v135
    %v137 = vpop.f32.mrf.mxu0
    %138 = vdwg.mxu0
    %v139 = vmax.f32 %v131, 0.0
    %v140 = vmax.f32 %v136, 0.0
    %vm141 = vcmask 31744
    %142 = vst.msk [vmem:[%s3] sm:$0xff] %vm141, %v139
    %143 = vst.msk [vmem:[%s3 + $0x8] sm:$0xff] %vm141, %v140
    %146 = vrot.lane.b32.xlu0 %v139, 124
    %v147 = vpop.permute.xlu0 %146
    %148 = vrot.lane.b32.xlu0 %v140, 124
    %v149 = vpop.permute.xlu0 %148
    %152 = vst.msk [vmem:[%s4] sm:$0xff] %vm141, %v147
    %153 = vst.msk [vmem:[%s4 + $0x8] sm:$0xff] %vm141, %v149
    // Predicated region
    $region22: #{tpu_custom_call.1} parent=1 // pred_check
      _
    $region23: #{tpu_custom_call.1} parent=1 // pred_check_branch
      %155 = sbr.rel (0) target = $region25
    $region24: #{tpu_custom_call.1} parent=1 // pred_region
      _
    $region25: #{tpu_custom_call.1} parent=1 // pred_fallthru
      _
    // Predicated region
    $region26: #{tpu_custom_call.1} parent=1 // pred_check
      _
    $region27: #{tpu_custom_call.1} parent=1 // pred_check_branch
      %157 = sbr.rel (0) target = $region29
    $region28: #{tpu_custom_call.1} parent=1 // pred_region
      _
    $region29: #{tpu_custom_call.1} parent=1 // pred_fallthru
      _
    // Predicated region
    $region30: #{tpu_custom_call.1} parent=1 // pred_check
      _
    $region31: #{tpu_custom_call.1} parent=1 // pred_check_branch
      %159 = sbr.rel (0) target = $region33
    $region32: #{tpu_custom_call.1} parent=1 // pred_region
      _
    $region33: #{tpu_custom_call.1} parent=1 // pred_fallthru
      _
    // Predicated region
    $region34: #{tpu_custom_call.1} parent=1 // pred_check
      _
    $region35: #{tpu_custom_call.1} parent=1 // pred_check_branch
      %161 = sbr.rel (0) target = $region37
    $region36: #{tpu_custom_call.1} parent=1 // pred_region
      _
    $region37: #{tpu_custom_call.1} parent=1 // pred_fallthru
      _
    %162 = vsyncpa [#allocation3], 1
    %163 = vsyncpa [#allocation5], 1

</llo_original>
